<compile_context>
chip_gen: v6e
topology: v6e:2x2x1
jax: 0.10.0
libtpu: 0.0.40
codegen_flags: <defaults>
</compile_context>

<pallas_src>
import math

import numpy as np
import jax
import jax.numpy as jnp
from jax.experimental import pallas as pl
from jax.experimental.pallas import tpu as pltpu


# -----------------------------------------------------------------------------
# Filter-bank construction (deterministic, mirrors torchaudio float64 build).
# -----------------------------------------------------------------------------
def _sinc_resample_kernel(orig_freq: int, new_freq: int,
                          lowpass_filter_width: int = 6,
                          rolloff: float = 0.99):
    gcd = math.gcd(int(orig_freq), int(new_freq))
    of = int(orig_freq) // gcd
    nf = int(new_freq) // gcd

    base_freq = min(of, nf) * rolloff
    width = int(math.ceil(lowpass_filter_width * of / base_freq))

    idx = np.arange(-width, width + of, dtype=np.float64)[None, :] / of
    t = np.arange(0, -nf, -1, dtype=np.float64)[:, None] / nf + idx
    t *= base_freq
    t = np.clip(t, -lowpass_filter_width, lowpass_filter_width)

    # hann window (default resampling_method="sinc_interp_hann")
    window = np.cos(t * math.pi / lowpass_filter_width / 2.0) ** 2
    t *= math.pi
    scale = base_freq / of
    safe_t = np.where(t == 0.0, 1.0, t)
    kernels = np.where(t == 0.0, 1.0, np.sin(safe_t) / safe_t)
    kernels *= window * scale

    return kernels.astype(np.float32), width, of, nf  # (nf, 2*width + of)


# -----------------------------------------------------------------------------
# Pallas kernel: out = chunks @ kbase + tail @ ktail   (one MXU tile per grid step)
# -----------------------------------------------------------------------------
def _resample_matmul_kernel(chunks_ref, tail_ref, kbase_ref, ktail_ref, out_ref):
    acc = jnp.dot(chunks_ref[...], kbase_ref[...],
                  preferred_element_type=jnp.float32)
    acc = acc + jnp.dot(tail_ref[...], ktail_ref[...],
                        preferred_element_type=jnp.float32)
    out_ref[...] = acc.astype(out_ref.dtype)


def _round_up(x: int, m: int) -> int:
    return ((x + m - 1) // m) * m


def resample(x: jax.Array, orig_freq: int = 16000, new_freq: int = 44100,
             *, tm_max: int = 512) -> jax.Array:
    """JAX/Pallas equivalent of torchaudio.transforms.Resample(orig_freq, new_freq)(x)."""
    kernels, width, of, nf = _sinc_resample_kernel(orig_freq, new_freq)
    tw = 2 * width                       # overlap columns (14 for 16k->44.1k)
    tw_pad = _round_up(tw, 8)            # sublane-aligned tail K (14 -> 16)

    shape = x.shape
    length = shape[-1]
    wav = x.reshape(-1, length).astype(jnp.float32)   # (num_wavs, T)
    num_wavs = wav.shape[0]

    n_frames = length // of + 1
    # torchaudio pads (width, width + of); extend so the shifted "tail" reshape
    # stays in-bounds (extra zeros never contribute to kept outputs).
    padded_len = max(length + 2 * width + of, (n_frames + 1) * of)
    padded = jnp.pad(wav, ((0, 0), (width, padded_len - length - width)))

    # frame f = [chunk f (of samples) | first 2*width samples of chunk f+1]
    chunks = padded[:, :n_frames * of].reshape(num_wavs * n_frames, of)
    tail = (padded[:, of:(n_frames + 1) * of]
            .reshape(num_wavs, n_frames, of)[:, :, :tw]
            .reshape(num_wavs * n_frames, tw))
    tail = jnp.pad(tail, ((0, 0), (0, tw_pad - tw)))

    M = num_wavs * n_frames
    tm = tm_max if M >= tm_max else max(8, _round_up(M, 8))
    m_pad = _round_up(M, tm)
    if m_pad != M:
        chunks = jnp.pad(chunks, ((0, m_pad - M), (0, 0)))
        tail = jnp.pad(tail, ((0, m_pad - M), (0, 0)))

    # Split filter banks, transposed for frames @ filter.T.
    kbase_t = jnp.asarray(np.ascontiguousarray(kernels[:, :of].T))      # (of, nf)
    ktail_np = np.zeros((tw_pad, nf), np.float32)
    ktail_np[:tw, :] = kernels[:, of:].T
    ktail_t = jnp.asarray(ktail_np)                                      # (tw_pad, nf)

    out = pl.pallas_call(
        _resample_matmul_kernel,
        out_shape=jax.ShapeDtypeStruct((m_pad, nf), jnp.float32),
        grid_spec=pltpu.PrefetchScalarGridSpec(
            num_scalar_prefetch=0,
            grid=(m_pad // tm,),
            in_specs=[
                pl.BlockSpec((tm, of), lambda i: (i, 0)),        # base chunks
                pl.BlockSpec((tm, tw_pad), lambda i: (i, 0)),    # overlap tail
                pl.BlockSpec((of, nf), lambda i: (0, 0)),        # base filter (grid-invariant)
                pl.BlockSpec((tw_pad, nf), lambda i: (0, 0)),    # tail filter (grid-invariant)
            ],
            out_specs=pl.BlockSpec((tm, nf), lambda i: (i, 0)),
        ),
        compiler_params=pltpu.CompilerParams(
            dimension_semantics=("parallel",),
        ),
    )(chunks, tail, kbase_t, ktail_t)

    # drop M padding rows, interleave polyphase outputs, crop to target length
    if m_pad != M:
        out = out[:M]
    target_length = (nf * length + of - 1) // of
    out = out.reshape(num_wavs, n_frames * nf)[:, :target_length]
    return out.reshape(shape[:-1] + (target_length,)).astype(x.dtype)


if __name__ == "__main__":
    key = jax.random.PRNGKey(0)
    # small waveform batch: (batch=2, channels=4, time=800); 16 kHz -> 44.1 kHz
    x = jax.random.normal(key, (2, 4, 800), dtype=jnp.float32)

    y = resample(x, orig_freq=16000, new_freq=44100)
    y = jax.block_until_ready(y)

    # pure-JAX reference of the same strided-conv-as-matmul math (sanity check)
    kernels, width, of, nf = _sinc_resample_kernel(16000, 44100)
    K = kernels.shape[1]
    length = x.shape[-1]
    wav = x.reshape(-1, length)
    padded = jnp.pad(wav, ((0, 0), (width, width + of)))
    n_frames = (padded.shape[1] - K) // of + 1
    fidx = np.arange(n_frames)[:, None] * of + np.arange(K)[None, :]
    frames = padded[:, fidx]                                        # (B*, F, K)
    ref = jnp.einsum("bfk,nk->bfn", frames, jnp.asarray(kernels))
    target_length = (nf * length + of - 1) // of
    ref = ref.reshape(wav.shape[0], -1)[:, :target_length]
    ref = ref.reshape(x.shape[:-1] + (target_length,))

    assert y.shape == x.shape[:-1] + (target_length,), y.shape
    assert y.shape[-1] == 2205, y.shape
    assert bool(jnp.all(jnp.isfinite(y)))
    assert bool(jnp.allclose(y, ref, atol=1e-4, rtol=1e-4)), \
        float(jnp.max(jnp.abs(y - ref)))
    print("KERNEL_OK")
</pallas_src>

<mosaic_0001>
module attributes {stable_mosaic.version = 11 : i64} {
  func.func @_resample_matmul_kernel(%arg0: i32, %arg1: memref<48x160xf32, #tpu.memory_space<vmem>>, %arg2: memref<48x16xf32, #tpu.memory_space<vmem>>, %arg3: memref<160x441xf32, #tpu.memory_space<vmem>>, %arg4: memref<16x441xf32, #tpu.memory_space<vmem>>, %arg5: memref<48x441xf32, #tpu.memory_space<vmem>>) attributes {dimension_semantics = [#tpu.dimension_semantics<parallel>], iteration_bounds = array<i64: 1>, scalar_prefetch = 0 : i64, scratch_operands = 0 : i64, tpu.core_type = #tpu.core_type<tc>, window_params = [{transform_indices = @transform_0, window_bounds = array<i64: 48, 160>}, {transform_indices = @transform_1, window_bounds = array<i64: 48, 16>}, {pipeline_mode = #tpu.pipeline_mode<synchronous>, transform_indices = @transform_2, window_bounds = array<i64: 160, 441>}, {pipeline_mode = #tpu.pipeline_mode<synchronous>, transform_indices = @transform_3, window_bounds = array<i64: 16, 441>}, {transform_indices = @transform_4, window_bounds = array<i64: 48, 441>}]} {
    %c0 = arith.constant 0 : index
    %c0_0 = arith.constant 0 : index
    %0 = vector.load %arg1[%c0, %c0_0] : memref<48x160xf32, #tpu.memory_space<vmem>>, vector<48x160xf32>
    %c0_1 = arith.constant 0 : index
    %c0_2 = arith.constant 0 : index
    %1 = vector.load %arg3[%c0_1, %c0_2] : memref<160x441xf32, #tpu.memory_space<vmem>>, vector<160x441xf32>
    %cst = arith.constant dense<0.000000e+00> : vector<48x441xf32>
    %2 = tpu.matmul %0, %1, %cst {dimension_numbers = #tpu.dot_dimension_numbers<[1], [0], [0], [1], [0, 0, 1, 1], [], []>} : vector<48x160xf32>, vector<160x441xf32>, vector<48x441xf32> -> vector<48x441xf32>
    %c0_3 = arith.constant 0 : index
    %c0_4 = arith.constant 0 : index
    %3 = vector.load %arg2[%c0_3, %c0_4] : memref<48x16xf32, #tpu.memory_space<vmem>>, vector<48x16xf32>
    %c0_5 = arith.constant 0 : index
    %c0_6 = arith.constant 0 : index
    %4 = vector.load %arg4[%c0_5, %c0_6] : memref<16x441xf32, #tpu.memory_space<vmem>>, vector<16x441xf32>
    %cst_7 = arith.constant dense<0.000000e+00> : vector<48x441xf32>
    %5 = tpu.matmul %3, %4, %cst_7 {dimension_numbers = #tpu.dot_dimension_numbers<[1], [0], [0], [1], [0, 0, 1, 1], [], []>} : vector<48x16xf32>, vector<16x441xf32>, vector<48x441xf32> -> vector<48x441xf32>
    %6 = arith.addf %2, %5 : vector<48x441xf32>
    %c0_8 = arith.constant 0 : index
    %c0_9 = arith.constant 0 : index
    %7 = vector.load %arg5[%c0_8, %c0_9] : memref<48x441xf32, #tpu.memory_space<vmem>>, vector<48x441xf32>
    tpu.vector_store %arg5[%c0_8, %c0_9], %6 {strides = array<i32>} : memref<48x441xf32, #tpu.memory_space<vmem>>, vector<48x441xf32>,
    return
  }
  func.func @transform_0(%arg0: i32) -> (i32, i32) {
    %c0_i32 = arith.constant 0 : i32
    %c0_i32_0 = arith.constant 0 : i32
    return %arg0, %c0_i32 : i32, i32
  }
  func.func @transform_1(%arg0: i32) -> (i32, i32) {
    %c0_i32 = arith.constant 0 : i32
    %c0_i32_0 = arith.constant 0 : i32
    return %arg0, %c0_i32 : i32, i32
  }
  func.func @transform_2(%arg0: i32) -> (i32, i32) {
    %c0_i32 = arith.constant 0 : i32
    %c0_i32_0 = arith.constant 0 : i32
    %c0_i32_1 = arith.constant 0 : i32
    return %c0_i32, %c0_i32_0 : i32, i32
  }
  func.func @transform_3(%arg0: i32) -> (i32, i32) {
    %c0_i32 = arith.constant 0 : i32
    %c0_i32_0 = arith.constant 0 : i32
    %c0_i32_1 = arith.constant 0 : i32
    return %c0_i32, %c0_i32_0 : i32, i32
  }
  func.func @transform_4(%arg0: i32) -> (i32, i32) {
    %c0_i32 = arith.constant 0 : i32
    %c0_i32_0 = arith.constant 0 : i32
    return %arg0, %c0_i32 : i32, i32
  }
}

</mosaic_0001>

<llo_original>
// kernel: tpu_custom_call.1
$region0: #{tpu_custom_call.1}
  #allocation0 [shape = 'u32[]', space=smem, size = 0x4, offset = 0x4, fixed_abs, tag = 'smem constant byte address 0x4 - core index']
  #allocation1 [shape = 'u32[144,128]{1,0:T(1,128)}', space=vmem, size = 0x12000, scoped, tag = 'internal scratch']
  %s0 = inlined_call_operand.hbm [shape: f32[48,160], index: 0, kind: input, shape index: {}]
  %s1 = inlined_call_operand.vmem [shape: f32[48,16], index: 1, kind: input, shape index: {}]
  %s2 = inlined_call_operand.hbm [shape: f32[160,441], index: 2, kind: input, shape index: {}]
  %s3 = inlined_call_operand.vmem [shape: f32[16,441], index: 3, kind: input, shape index: {}]
  %s4 = inlined_call_operand.hbm [shape: f32[48,441], index: 4, kind: output, shape index: {}]
  %s5 = sld [smem:[#allocation0]]
  $region34: #{tpu_custom_call.1} parent=0
    _
  %s7 = ssub.s32 1, %s5
  %s8 = scalar_select 0, %s7, %s5
  $region1: #{tpu_custom_call.1} parent=0
    #allocation2 [shape = 'u8[49152]{0}', space=vmem, size = 0xc000, scoped, tag = 'input window, operand 0, single buffered']
    #allocation3 [shape = 's32[1]{0}', space=sflag, size = 0x4, scoped, tag = 'scoped memory for tpu_custom_call.1']
    #allocation4 [shape = 's32[1]{0}', space=sflag, size = 0x4, scoped, tag = 'scoped memory for tpu_custom_call.1']
    #allocation5 [shape = 'u8[327680]{0}', space=vmem, size = 0x50000, scoped, tag = 'input window, operand 2, single buffered']
    #allocation6 [shape = 's32[1]{0}', space=sflag, size = 0x4, scoped, tag = 'scoped memory for tpu_custom_call.1']
    #allocation7 [shape = 'u8[98304]{0}', space=vmem, size = 0x18000, scoped, tag = 'output window, operand 0, single buffered']
    %9 = vsyncpa [#allocation3], 0
    %10 = vsyncpa [#allocation6], 0
    %11 = vsyncpa [#allocation4], 0
    // Predicated region
    $region2: #{tpu_custom_call.1} parent=1 // pred_check
      _
    $region3: #{tpu_custom_call.1} parent=1 // pred_check_branch
      %13 = sbr.rel (0) target = $region5
    $region4: #{tpu_custom_call.1} parent=1 // pred_region
      %s15 = ssub.s32 1536, 1536
      %16 = vsyncadd [#allocation3], %s15
      %s17 = sshll.u32 [#allocation2], 4
      %s18 = int_to_ptr.vmem [resolvable:$true] %s17
      %23 = dma.hbm_to_vmem [thread:$0]  %s0, 1536, %s18, [#allocation3], 256, 256, 16
    $region5: #{tpu_custom_call.1} parent=1 // pred_fallthru
      _
    // Predicated region
    $region6: #{tpu_custom_call.1} parent=1 // pred_check
      _
    $region7: #{tpu_custom_call.1} parent=1 // pred_check_branch
      %25 = sbr.rel (0) target = $region9
    $region8: #{tpu_custom_call.1} parent=1 // pred_region
      _
    $region9: #{tpu_custom_call.1} parent=1 // pred_fallthru
      _
    // Predicated region
    $region10: #{tpu_custom_call.1} parent=1 // pred_check
      _
    $region11: #{tpu_custom_call.1} parent=1 // pred_check_branch
      %27 = sbr.rel (0) target = $region13
    $region12: #{tpu_custom_call.1} parent=1 // pred_region
      %s29 = ssub.s32 10240, 10240
      %30 = vsyncadd [#allocation6], %s29
      %s31 = sshll.u32 [#allocation5], 4
      %s32 = int_to_ptr.vmem [resolvable:$true] %s31
      %37 = dma.hbm_to_vmem [thread:$0]  %s2, 10240, %s32, [#allocation6], 512, 512, 32
    $region13: #{tpu_custom_call.1} parent=1 // pred_fallthru
      _
    // Predicated region
    $region14: #{tpu_custom_call.1} parent=1 // pred_check
      _
    $region15: #{tpu_custom_call.1} parent=1 // pred_check_branch
      %39 = sbr.rel (0) target = $region17
    $region16: #{tpu_custom_call.1} parent=1 // pred_region
      _
    $region17: #{tpu_custom_call.1} parent=1 // pred_fallthru
      _
    // Predicated region
    $region18: #{tpu_custom_call.1} parent=1 // pred_check
      _
    $region19: #{tpu_custom_call.1} parent=1 // pred_check_branch
      %41 = sbr.rel (0) target = $region21
    $region20: #{tpu_custom_call.1} parent=1 // pred_region
      %42 = dma.done [#allocation3], 1536
    $region21: #{tpu_custom_call.1} parent=1 // pred_fallthru
      _
    // Predicated region
    $region22: #{tpu_custom_call.1} parent=1 // pred_check
      _
    $region23: #{tpu_custom_call.1} parent=1 // pred_check_branch
      %44 = sbr.rel (0) target = $region25
    $region24: #{tpu_custom_call.1} parent=1 // pred_region
      %45 = dma.done [#allocation6], 10240
    $region25: #{tpu_custom_call.1} parent=1 // pred_fallthru
      _
    %v46 = vld [vmem:[#allocation2] sm:$0xff]
    %v47 = vld [vmem:[#allocation2 + $0x8] sm:$0xff]
    %v48 = vld [vmem:[#allocation2 + $0x10] sm:$0xff]
    %v49 = vld [vmem:[#allocation2 + $0x18] sm:$0xff]
    %v50 = vld [vmem:[#allocation2 + $0x20] sm:$0xff]
    %v51 = vld [vmem:[#allocation2 + $0x28] sm:$0xff]
    %v52 = vld [vmem:[#allocation2 + $0x30] sm:$0xff]
    %v53 = vld [vmem:[#allocation2 + $0x38] sm:$0xff]
    %v54 = vld [vmem:[#allocation2 + $0x40] sm:$0xff]
    %v55 = vld [vmem:[#allocation2 + $0x48] sm:$0xff]
    %v56 = vld [vmem:[#allocation2 + $0x50] sm:$0xff]
    %v57 = vld [vmem:[#allocation2 + $0x58] sm:$0xff]
    %v58 = vld [vmem:[#allocation5] sm:$0xff]
    %v59 = vld [vmem:[#allocation5 + $0x8] sm:$0xff]
    %v60 = vld [vmem:[#allocation5 + $0x10] sm:$0xff]
    %v61 = vld [vmem:[#allocation5 + $0x18] sm:$0xff]
    %v62 = vld [vmem:[#allocation5 + $0x20] sm:$0xff]
    %v63 = vld [vmem:[#allocation5 + $0x28] sm:$0xff]
    %v64 = vld [vmem:[#allocation5 + $0x30] sm:$0xff]
    %v65 = vld [vmem:[#allocation5 + $0x38] sm:$0xff]
    %v66 = vld [vmem:[#allocation5 + $0x40] sm:$0xff]
    %v67 = vld [vmem:[#allocation5 + $0x48] sm:$0xff]
    %v68 = vld [vmem:[#allocation5 + $0x50] sm:$0xff]
    %v69 = vld [vmem:[#allocation5 + $0x58] sm:$0xff]
    %v70 = vld [vmem:[#allocation5 + $0x60] sm:$0xff]
    %v71 = vld [vmem:[#allocation5 + $0x68] sm:$0xff]
    %v72 = vld [vmem:[#allocation5 + $0x70] sm:$0xff]
    %v73 = vld [vmem:[#allocation5 + $0x78] sm:$0xff]
    %v74 = vld [vmem:[#allocation5 + $0x80] sm:$0xff]
    %v75 = vld [vmem:[#allocation5 + $0x88] sm:$0xff]
    %v76 = vld [vmem:[#allocation5 + $0x90] sm:$0xff]
    %v77 = vld [vmem:[#allocation5 + $0x98] sm:$0xff]
    %v78 = vld [vmem:[#allocation5 + $0xa0] sm:$0xff]
    %v79 = vld [vmem:[#allocation5 + $0xa8] sm:$0xff]
    %v80 = vld [vmem:[#allocation5 + $0xb0] sm:$0xff]
    %v81 = vld [vmem:[#allocation5 + $0xb8] sm:$0xff]
    %v82 = vld [vmem:[#allocation5 + $0xc0] sm:$0xff]
    %v83 = vld [vmem:[#allocation5 + $0xc8] sm:$0xff]
    %v84 = vld [vmem:[#allocation5 + $0xd0] sm:$0xff]
    %v85 = vld [vmem:[#allocation5 + $0xd8] sm:$0xff]
    %v86 = vld [vmem:[#allocation5 + $0xe0] sm:$0xff]
    %v87 = vld [vmem:[#allocation5 + $0xe8] sm:$0xff]
    %v88 = vld [vmem:[#allocation5 + $0xf0] sm:$0xff]
    %v89 = vld [vmem:[#allocation5 + $0xf8] sm:$0xff]
    %v90 = vld [vmem:[#allocation5 + $0x100] sm:$0xff]
    %v91 = vld [vmem:[#allocation5 + $0x108] sm:$0xff]
    %v92 = vld [vmem:[#allocation5 + $0x110] sm:$0xff]
    %v93 = vld [vmem:[#allocation5 + $0x118] sm:$0xff]
    %v94 = vld [vmem:[#allocation5 + $0x120] sm:$0xff]
    %v95 = vld [vmem:[#allocation5 + $0x128] sm:$0xff]
    %v96 = vld [vmem:[#allocation5 + $0x130] sm:$0xff]
    %v97 = vld [vmem:[#allocation5 + $0x138] sm:$0xff]
    %v98 = vld [vmem:[#allocation5 + $0x140] sm:$0xff]
    %v99 = vld [vmem:[#allocation5 + $0x148] sm:$0xff]
    %v100 = vld [vmem:[#allocation5 + $0x150] sm:$0xff]
    %v101 = vld [vmem:[#allocation5 + $0x158] sm:$0xff]
    %v102 = vld [vmem:[#allocation5 + $0x160] sm:$0xff]
    %v103 = vld [vmem:[#allocation5 + $0x168] sm:$0xff]
    %v104 = vld [vmem:[#allocation5 + $0x170] sm:$0xff]
    %v105 = vld [vmem:[#allocation5 + $0x178] sm:$0xff]
    %v106 = vld [vmem:[#allocation5 + $0x180] sm:$0xff]
    %v107 = vld [vmem:[#allocation5 + $0x188] sm:$0xff]
    %v108 = vld [vmem:[#allocation5 + $0x190] sm:$0xff]
    %v109 = vld [vmem:[#allocation5 + $0x198] sm:$0xff]
    %v110 = vld [vmem:[#allocation5 + $0x1a0] sm:$0xff]
    %v111 = vld [vmem:[#allocation5 + $0x1a8] sm:$0xff]
    %v112 = vld [vmem:[#allocation5 + $0x1b0] sm:$0xff]
    %v113 = vld [vmem:[#allocation5 + $0x1b8] sm:$0xff]
    %v114 = vld [vmem:[#allocation5 + $0x1c0] sm:$0xff]
    %v115 = vld [vmem:[#allocation5 + $0x1c8] sm:$0xff]
    %v116 = vld [vmem:[#allocation5 + $0x1d0] sm:$0xff]
    %v117 = vld [vmem:[#allocation5 + $0x1d8] sm:$0xff]
    %v118 = vld [vmem:[#allocation5 + $0x1e0] sm:$0xff]
    %v119 = vld [vmem:[#allocation5 + $0x1e8] sm:$0xff]
    %v120 = vld [vmem:[#allocation5 + $0x1f0] sm:$0xff]
    %v121 = vld [vmem:[#allocation5 + $0x1f8] sm:$0xff]
    %v122 = vld [vmem:[#allocation5 + $0x200] sm:$0xff]
    %v123 = vld [vmem:[#allocation5 + $0x208] sm:$0xff]
    %v124 = vld [vmem:[#allocation5 + $0x210] sm:$0xff]
    %v125 = vld [vmem:[#allocation5 + $0x218] sm:$0xff]
    %v126 = vld [vmem:[#allocation5 + $0x220] sm:$0xff]
    %v127 = vld [vmem:[#allocation5 + $0x228] sm:$0xff]
    %v128 = vld [vmem:[#allocation5 + $0x230] sm:$0xff]
    %v129 = vld [vmem:[#allocation5 + $0x238] sm:$0xff]
    %v130 = vld [vmem:[#allocation5 + $0x240] sm:$0xff]
    %v131 = vld [vmem:[#allocation5 + $0x248] sm:$0xff]
    %v132 = vld [vmem:[#allocation5 + $0x250] sm:$0xff]
    %v133 = vld [vmem:[#allocation5 + $0x258] sm:$0xff]
    %v134 = vld [vmem:[#allocation5 + $0x260] sm:$0xff]
    %v135 = vld [vmem:[#allocation5 + $0x268] sm:$0xff]
    %v136 = vld [vmem:[#allocation5 + $0x270] sm:$0xff]
    %v137 = vld [vmem:[#allocation5 + $0x278] sm:$0xff]
    %v138 = vld [vmem:[%s1] sm:$0xff]
    %v139 = vld [vmem:[%s1 + $0x8] sm:$0xff]
    %v140 = vld [vmem:[%s1 + $0x10] sm:$0xff]
    %v141 = vld [vmem:[%s1 + $0x18] sm:$0xff]
    %v142 = vld [vmem:[%s1 + $0x20] sm:$0xff]
    %v143 = vld [vmem:[%s1 + $0x28] sm:$0xff]
    %v144 = vld [vmem:[%s3] sm:$0xff]
    %v145 = vld [vmem:[%s3 + $0x8] sm:$0xff]
    %v146 = vld [vmem:[%s3 + $0x10] sm:$0xff]
    %v147 = vld [vmem:[%s3 + $0x18] sm:$0xff]
    %v148 = vld [vmem:[%s3 + $0x20] sm:$0xff]
    %v149 = vld [vmem:[%s3 + $0x28] sm:$0xff]
    %v150 = vld [vmem:[%s3 + $0x30] sm:$0xff]
    %v151 = vld [vmem:[%s3 + $0x38] sm:$0xff]
    %vm152 = vcmask 130048
    %v154 = vsel %vm152, %v138, 0
    %v157 = vsel %vm152, %v139, 0
    %v160 = vsel %vm152, %v140, 0
    %v163 = vsel %vm152, %v141, 0
    %v166 = vsel %vm152, %v142, 0
    %v169 = vsel %vm152, %v143, 0
    %171 = vmatprep.subr.mxu0 0.0
    %172 = vmatpush1.msra.mxu0 0.0
    %173 = vmatprep.subr.mxu0 0.0
    %174 = vmatpush1.msra.mxu0 0.0
    %175 = vmatprep.subr.mxu0 0.0
    %176 = vmatpush1.msra.mxu0 0.0
    %177 = vmatprep.subr.mxu0 0.0
    %178 = vmatpush1.msra.mxu0 0.0
    %179 = vmatprep.subr.mxu0 0.0
    %180 = vmatpush1.msra.mxu0 0.0
    %181 = vmatprep.subr.mxu0 0.0
    %182 = vmatpush1.msra.mxu0 0.0
    %183 = vmatprep.subr.mxu0 0.0
    %184 = vmatpush1.msra.mxu0 0.0
    %185 = vmatprep.subr.mxu0 0.0
    %186 = vmatpush1.msra.mxu0 0.0
    %187 = vmatprep.subr.mxu0 0.0
    %188 = vmatpush1.msra.mxu0 0.0
    %189 = vmatprep.subr.mxu0 0.0
    %190 = vmatpush1.msra.mxu0 0.0
    %191 = vmatprep.subr.mxu0 0.0
    %192 = vmatpush1.msra.mxu0 0.0
    %193 = vmatprep.subr.mxu0 0.0
    %194 = vmatpush1.msra.mxu0 0.0
    %195 = vmatprep.subr.mxu0 0.0
    %196 = vmatpush1.msra.mxu0 0.0
    %197 = vmatprep.subr.mxu0 0.0
    %198 = vmatpush1.msra.mxu0 0.0
    %199 = vmatprep.subr.mxu0 %v149
    %200 = vmatpush1.msra.mxu0 %v148
    %201 = vmatprep.subr.mxu0 %v145
    %202 = vmatpush1.msra.mxu0 %v144
    %203 = vmatprep.subr.mxu0 0.0
    %204 = vmatpush2.msra.mxu0 0.0
    %205 = vmatprep.subr.mxu0 0.0
    %206 = vmatpush2.msra.mxu0 0.0
    %207 = vmatprep.subr.mxu0 0.0
    %208 = vmatpush2.msra.mxu0 0.0
    %209 = vmatprep.subr.mxu0 0.0
    %210 = vmatpush2.msra.mxu0 0.0
    %211 = vmatprep.subr.mxu0 0.0
    %212 = vmatpush2.msra.mxu0 0.0
    %213 = vmatprep.subr.mxu0 0.0
    %214 = vmatpush2.msra.mxu0 0.0
    %215 = vmatprep.subr.mxu0 0.0
    %216 = vmatpush2.msra.mxu0 0.0
    %217 = vmatprep.subr.mxu0 0.0
    %218 = vmatpush2.msra.mxu0 0.0
    %219 = vmatprep.subr.mxu0 0.0
    %220 = vmatpush2.msra.mxu0 0.0
    %221 = vmatprep.subr.mxu0 0.0
    %222 = vmatpush2.msra.mxu0 0.0
    %223 = vmatprep.subr.mxu0 0.0
    %224 = vmatpush2.msra.mxu0 0.0
    %225 = vmatprep.subr.mxu0 0.0
    %226 = vmatpush2.msra.mxu0 0.0
    %227 = vmatprep.subr.mxu0 0.0
    %228 = vmatpush2.msra.mxu0 0.0
    %229 = vmatprep.subr.mxu0 0.0
    %230 = vmatpush2.msra.mxu0 0.0
    %231 = vmatprep.subr.mxu0 0.0
    %232 = vmatpush2.msra.mxu0 0.0
    %233 = vmatprep.subr.mxu0 0.0
    %234 = vmatpush2.msra.mxu0 0.0
    %235 = vmatprep.mubr.f32.mxu0 0.0
    %236 = vmatmul.mubr.f32.gmra.mxu0 %v154
    %v237 = vpop.f32.mrf.mxu0
    %v238 = vadd.f32 0.0, %v237
    %v239 = vpop.f32.mrf.mxu0
    %v240 = vadd.f32 0.0, %v239
    %241 = vmatprep.mubr.f32.mxu0 0.0
    %242 = vmatmul.mubr.f32.gmra.mxu0 %v157
    %v243 = vpop.f32.mrf.mxu0
    %v244 = vadd.f32 0.0, %v243
    %v245 = vpop.f32.mrf.mxu0
    %v246 = vadd.f32 0.0, %v245
    %247 = vmatprep.mubr.f32.mxu0 0.0
    %248 = vmatmul.mubr.f32.gmra.mxu0 %v160
    %v249 = vpop.f32.mrf.mxu0
    %v250 = vadd.f32 0.0, %v249
    %v251 = vpop.f32.mrf.mxu0
    %v252 = vadd.f32 0.0, %v251
    %253 = vmatprep.mubr.f32.mxu0 0.0
    %254 = vmatmul.mubr.f32.gmra.mxu0 %v163
    %v255 = vpop.f32.mrf.mxu0
    %v256 = vadd.f32 0.0, %v255
    %v257 = vpop.f32.mrf.mxu0
    %v258 = vadd.f32 0.0, %v257
    %259 = vmatprep.mubr.f32.mxu0 0.0
    %260 = vmatmul.mubr.f32.gmra.mxu0 %v166
    %v261 = vpop.f32.mrf.mxu0
    %v262 = vadd.f32 0.0, %v261
    %v263 = vpop.f32.mrf.mxu0
    %v264 = vadd.f32 0.0, %v263
    %265 = vmatprep.mubr.f32.mxu0 0.0
    %266 = vmatmul.mubr.f32.gmra.mxu0 %v169
    %v267 = vpop.f32.mrf.mxu0
    %v268 = vadd.f32 0.0, %v267
    %v269 = vpop.f32.mrf.mxu0
    %v270 = vadd.f32 0.0, %v269
    %271 = vdwg.mxu0
    %272 = vmatprep.subr.mxu0 0.0
    %273 = vmatpush1.msra.mxu0 0.0
    %274 = vmatprep.subr.mxu0 0.0
    %275 = vmatpush1.msra.mxu0 0.0
    %276 = vmatprep.subr.mxu0 0.0
    %277 = vmatpush1.msra.mxu0 0.0
    %278 = vmatprep.subr.mxu0 0.0
    %279 = vmatpush1.msra.mxu0 0.0
    %280 = vmatprep.subr.mxu0 0.0
    %281 = vmatpush1.msra.mxu0 0.0
    %282 = vmatprep.subr.mxu0 0.0
    %283 = vmatpush1.msra.mxu0 0.0
    %284 = vmatprep.subr.mxu0 0.0
    %285 = vmatpush1.msra.mxu0 0.0
    %286 = vmatprep.subr.mxu0 0.0
    %287 = vmatpush1.msra.mxu0 0.0
    %288 = vmatprep.subr.mxu0 0.0
    %289 = vmatpush1.msra.mxu0 0.0
    %290 = vmatprep.subr.mxu0 0.0
    %291 = vmatpush1.msra.mxu0 0.0
    %292 = vmatprep.subr.mxu0 0.0
    %293 = vmatpush1.msra.mxu0 0.0
    %294 = vmatprep.subr.mxu0 0.0
    %295 = vmatpush1.msra.mxu0 0.0
    %296 = vmatprep.subr.mxu0 0.0
    %297 = vmatpush1.msra.mxu0 0.0
    %298 = vmatprep.subr.mxu0 0.0
    %299 = vmatpush1.msra.mxu0 0.0
    %300 = vmatprep.subr.mxu0 %v151
    %301 = vmatpush1.msra.mxu0 %v150
    %302 = vmatprep.subr.mxu0 %v147
    %303 = vmatpush1.msra.mxu0 %v146
    %304 = vmatprep.subr.mxu0 0.0
    %305 = vmatpush2.msra.mxu0 0.0
    %306 = vmatprep.subr.mxu0 0.0
    %307 = vmatpush2.msra.mxu0 0.0
    %308 = vmatprep.subr.mxu0 0.0
    %309 = vmatpush2.msra.mxu0 0.0
    %310 = vmatprep.subr.mxu0 0.0
    %311 = vmatpush2.msra.mxu0 0.0
    %312 = vmatprep.subr.mxu0 0.0
    %313 = vmatpush2.msra.mxu0 0.0
    %314 = vmatprep.subr.mxu0 0.0
    %315 = vmatpush2.msra.mxu0 0.0
    %316 = vmatprep.subr.mxu0 0.0
    %317 = vmatpush2.msra.mxu0 0.0
    %318 = vmatprep.subr.mxu0 0.0
    %319 = vmatpush2.msra.mxu0 0.0
    %320 = vmatprep.subr.mxu0 0.0
    %321 = vmatpush2.msra.mxu0 0.0
    %322 = vmatprep.subr.mxu0 0.0
    %323 = vmatpush2.msra.mxu0 0.0
    %324 = vmatprep.subr.mxu0 0.0
    %325 = vmatpush2.msra.mxu0 0.0
    %326 = vmatprep.subr.mxu0 0.0
    %327 = vmatpush2.msra.mxu0 0.0
    %328 = vmatprep.subr.mxu0 0.0
    %329 = vmatpush2.msra.mxu0 0.0
    %330 = vmatprep.subr.mxu0 0.0
    %331 = vmatpush2.msra.mxu0 0.0
    %332 = vmatprep.subr.mxu0 0.0
    %333 = vmatpush2.msra.mxu0 0.0
    %334 = vmatprep.subr.mxu0 0.0
    %335 = vmatpush2.msra.mxu0 0.0
    %336 = vmatprep.mubr.f32.mxu0 0.0
    %337 = vmatmul.mubr.f32.gmra.mxu0 %v154
    %v338 = vpop.f32.mrf.mxu0
    %v339 = vadd.f32 0.0, %v338
    %v340 = vpop.f32.mrf.mxu0
    %v341 = vadd.f32 0.0, %v340
    %342 = vmatprep.mubr.f32.mxu0 0.0
    %343 = vmatmul.mubr.f32.gmra.mxu0 %v157
    %v344 = vpop.f32.mrf.mxu0
    %v345 = vadd.f32 0.0, %v344
    %v346 = vpop.f32.mrf.mxu0
    %v347 = vadd.f32 0.0, %v346
    %348 = vmatprep.mubr.f32.mxu0 0.0
    %349 = vmatmul.mubr.f32.gmra.mxu0 %v160
    %v350 = vpop.f32.mrf.mxu0
    %v351 = vadd.f32 0.0, %v350
    %v352 = vpop.f32.mrf.mxu0
    %v353 = vadd.f32 0.0, %v352
    %354 = vmatprep.mubr.f32.mxu0 0.0
    %355 = vmatmul.mubr.f32.gmra.mxu0 %v163
    %v356 = vpop.f32.mrf.mxu0
    %v357 = vadd.f32 0.0, %v356
    %v358 = vpop.f32.mrf.mxu0
    %v359 = vadd.f32 0.0, %v358
    %360 = vmatprep.mubr.f32.mxu0 0.0
    %361 = vmatmul.mubr.f32.gmra.mxu0 %v166
    %v362 = vpop.f32.mrf.mxu0
    %v363 = vadd.f32 0.0, %v362
    %v364 = vpop.f32.mrf.mxu0
    %v365 = vadd.f32 0.0, %v364
    %366 = vmatprep.mubr.f32.mxu0 0.0
    %367 = vmatmul.mubr.f32.gmra.mxu0 %v169
    %v368 = vpop.f32.mrf.mxu0
    %v369 = vadd.f32 0.0, %v368
    %v370 = vpop.f32.mrf.mxu0
    %v371 = vadd.f32 0.0, %v370
    %372 = vdwg.mxu0
    %vm373 = vcmask 261120
    %v375 = vsel %vm373, %v47, 0
    %v378 = vsel %vm373, %v49, 0
    %v381 = vsel %vm373, %v51, 0
    %v384 = vsel %vm373, %v53, 0
    %v387 = vsel %vm373, %v55, 0
    %v390 = vsel %vm373, %v57, 0
    %392 = vmatprep.subr.mxu0 %v119
    %393 = vmatpush1.msra.mxu0 %v118
    %394 = vmatprep.subr.mxu0 %v115
    %395 = vmatpush1.msra.mxu0 %v114
    %396 = vmatprep.subr.mxu0 %v111
    %397 = vmatpush1.msra.mxu0 %v110
    %398 = vmatprep.subr.mxu0 %v107
    %399 = vmatpush1.msra.mxu0 %v106
    %400 = vmatprep.subr.mxu0 %v103
    %401 = vmatpush1.msra.mxu0 %v102
    %402 = vmatprep.subr.mxu0 %v99
    %403 = vmatpush1.msra.mxu0 %v98
    %404 = vmatprep.subr.mxu0 %v95
    %405 = vmatpush1.msra.mxu0 %v94
    %406 = vmatprep.subr.mxu0 %v91
    %407 = vmatpush1.msra.mxu0 %v90
    %408 = vmatprep.subr.mxu0 %v87
    %409 = vmatpush1.msra.mxu0 %v86
    %410 = vmatprep.subr.mxu0 %v83
    %411 = vmatpush1.msra.mxu0 %v82
    %412 = vmatprep.subr.mxu0 %v79
    %413 = vmatpush1.msra.mxu0 %v78
    %414 = vmatprep.subr.mxu0 %v75
    %415 = vmatpush1.msra.mxu0 %v74
    %416 = vmatprep.subr.mxu0 %v71
    %417 = vmatpush1.msra.mxu0 %v70
    %418 = vmatprep.subr.mxu0 %v67
    %419 = vmatpush1.msra.mxu0 %v66
    %420 = vmatprep.subr.mxu0 %v63
    %421 = vmatpush1.msra.mxu0 %v62
    %422 = vmatprep.subr.mxu0 %v59
    %423 = vmatpush1.msra.mxu0 %v58
    %424 = vmatprep.subr.mxu0 0.0
    %425 = vmatpush2.msra.mxu0 0.0
    %426 = vmatprep.subr.mxu0 0.0
    %427 = vmatpush2.msra.mxu0 0.0
    %428 = vmatprep.subr.mxu0 0.0
    %429 = vmatpush2.msra.mxu0 0.0
    %430 = vmatprep.subr.mxu0 0.0
    %431 = vmatpush2.msra.mxu0 0.0
    %432 = vmatprep.subr.mxu0 0.0
    %433 = vmatpush2.msra.mxu0 0.0
    %434 = vmatprep.subr.mxu0 0.0
    %435 = vmatpush2.msra.mxu0 0.0
    %436 = vmatprep.subr.mxu0 0.0
    %437 = vmatpush2.msra.mxu0 0.0
    %438 = vmatprep.subr.mxu0 0.0
    %439 = vmatpush2.msra.mxu0 0.0
    %440 = vmatprep.subr.mxu0 0.0
    %441 = vmatpush2.msra.mxu0 0.0
    %442 = vmatprep.subr.mxu0 0.0
    %443 = vmatpush2.msra.mxu0 0.0
    %444 = vmatprep.subr.mxu0 0.0
    %445 = vmatpush2.msra.mxu0 0.0
    %446 = vmatprep.subr.mxu0 0.0
    %447 = vmatpush2.msra.mxu0 0.0
    %448 = vmatprep.subr.mxu0 %v135
    %449 = vmatpush2.msra.mxu0 %v134
    %450 = vmatprep.subr.mxu0 %v131
    %451 = vmatpush2.msra.mxu0 %v130
    %452 = vmatprep.subr.mxu0 %v127
    %453 = vmatpush2.msra.mxu0 %v126
    %454 = vmatprep.subr.mxu0 %v123
    %455 = vmatpush2.msra.mxu0 %v122
    %456 = vmatprep.mubr.f32.mxu0 %v375
    %457 = vmatmul.mubr.f32.gmra.mxu0 %v46
    %v458 = vpop.f32.mrf.mxu0
    %v459 = vadd.f32 %v238, %v458
    %v460 = vpop.f32.mrf.mxu0
    %v461 = vadd.f32 %v240, %v460
    %462 = vmatprep.mubr.f32.mxu0 %v378
    %463 = vmatmul.mubr.f32.gmra.mxu0 %v48
    %v464 = vpop.f32.mrf.mxu0
    %v465 = vadd.f32 %v244, %v464
    %v466 = vpop.f32.mrf.mxu0
    %v467 = vadd.f32 %v246, %v466
    %468 = vmatprep.mubr.f32.mxu0 %v381
    %469 = vmatmul.mubr.f32.gmra.mxu0 %v50
    %v470 = vpop.f32.mrf.mxu0
    %v471 = vadd.f32 %v250, %v470
    %v472 = vpop.f32.mrf.mxu0
    %v473 = vadd.f32 %v252, %v472
    %474 = vmatprep.mubr.f32.mxu0 %v384
    %475 = vmatmul.mubr.f32.gmra.mxu0 %v52
    %v476 = vpop.f32.mrf.mxu0
    %v477 = vadd.f32 %v256, %v476
    %v478 = vpop.f32.mrf.mxu0
    %v479 = vadd.f32 %v258, %v478
    %480 = vmatprep.mubr.f32.mxu0 %v387
    %481 = vmatmul.mubr.f32.gmra.mxu0 %v54
    %v482 = vpop.f32.mrf.mxu0
    %v483 = vadd.f32 %v262, %v482
    %v484 = vpop.f32.mrf.mxu0
    %v485 = vadd.f32 %v264, %v484
    %486 = vmatprep.mubr.f32.mxu0 %v390
    %487 = vmatmul.mubr.f32.gmra.mxu0 %v56
    %v488 = vpop.f32.mrf.mxu0
    %v489 = vadd.f32 %v268, %v488
    %v490 = vpop.f32.mrf.mxu0
    %v491 = vadd.f32 %v270, %v490
    %492 = vdwg.mxu0
    %493 = vmatprep.subr.mxu0 %v121
    %494 = vmatpush1.msra.mxu0 %v120
    %495 = vmatprep.subr.mxu0 %v117
    %496 = vmatpush1.msra.mxu0 %v116
    %497 = vmatprep.subr.mxu0 %v113
    %498 = vmatpush1.msra.mxu0 %v112
    %499 = vmatprep.subr.mxu0 %v109
    %500 = vmatpush1.msra.mxu0 %v108
    %501 = vmatprep.subr.mxu0 %v105
    %502 = vmatpush1.msra.mxu0 %v104
    %503 = vmatprep.subr.mxu0 %v101
    %504 = vmatpush1.msra.mxu0 %v100
    %505 = vmatprep.subr.mxu0 %v97
    %506 = vmatpush1.msra.mxu0 %v96
    %507 = vmatprep.subr.mxu0 %v93
    %508 = vmatpush1.msra.mxu0 %v92
    %509 = vmatprep.subr.mxu0 %v89
    %510 = vmatpush1.msra.mxu0 %v88
    %511 = vmatprep.subr.mxu0 %v85
    %512 = vmatpush1.msra.mxu0 %v84
    %513 = vmatprep.subr.mxu0 %v81
    %514 = vmatpush1.msra.mxu0 %v80
    %515 = vmatprep.subr.mxu0 %v77
    %516 = vmatpush1.msra.mxu0 %v76
    %517 = vmatprep.subr.mxu0 %v73
    %518 = vmatpush1.msra.mxu0 %v72
    %519 = vmatprep.subr.mxu0 %v69
    %520 = vmatpush1.msra.mxu0 %v68
    %521 = vmatprep.subr.mxu0 %v65
    %522 = vmatpush1.msra.mxu0 %v64
    %523 = vmatprep.subr.mxu0 %v61
    %524 = vmatpush1.msra.mxu0 %v60
    %525 = vmatprep.subr.mxu0 0.0
    %526 = vmatpush2.msra.mxu0 0.0
    %527 = vmatprep.subr.mxu0 0.0
    %528 = vmatpush2.msra.mxu0 0.0
    %529 = vmatprep.subr.mxu0 0.0
    %530 = vmatpush2.msra.mxu0 0.0
    %531 = vmatprep.subr.mxu0 0.0
    %532 = vmatpush2.msra.mxu0 0.0
    %533 = vmatprep.subr.mxu0 0.0
    %534 = vmatpush2.msra.mxu0 0.0
    %535 = vmatprep.subr.mxu0 0.0
    %536 = vmatpush2.msra.mxu0 0.0
    %537 = vmatprep.subr.mxu0 0.0
    %538 = vmatpush2.msra.mxu0 0.0
    %539 = vmatprep.subr.mxu0 0.0
    %540 = vmatpush2.msra.mxu0 0.0
    %541 = vmatprep.subr.mxu0 0.0
    %542 = vmatpush2.msra.mxu0 0.0
    %543 = vmatprep.subr.mxu0 0.0
    %544 = vmatpush2.msra.mxu0 0.0
    %545 = vmatprep.subr.mxu0 0.0
    %546 = vmatpush2.msra.mxu0 0.0
    %547 = vmatprep.subr.mxu0 0.0
    %548 = vmatpush2.msra.mxu0 0.0
    %549 = vmatprep.subr.mxu0 %v137
    %550 = vmatpush2.msra.mxu0 %v136
    %551 = vmatprep.subr.mxu0 %v133
    %552 = vmatpush2.msra.mxu0 %v132
    %553 = vmatprep.subr.mxu0 %v129
    %554 = vmatpush2.msra.mxu0 %v128
    %555 = vmatprep.subr.mxu0 %v125
    %556 = vmatpush2.msra.mxu0 %v124
    %557 = vmatprep.mubr.f32.mxu0 %v375
    %558 = vmatmul.mubr.f32.gmra.mxu0 %v46
    %v559 = vpop.f32.mrf.mxu0
    %v560 = vadd.f32 %v339, %v559
    %v561 = vpop.f32.mrf.mxu0
    %v562 = vadd.f32 %v341, %v561
    %563 = vmatprep.mubr.f32.mxu0 %v378
    %564 = vmatmul.mubr.f32.gmra.mxu0 %v48
    %v565 = vpop.f32.mrf.mxu0
    %v566 = vadd.f32 %v345, %v565
    %v567 = vpop.f32.mrf.mxu0
    %v568 = vadd.f32 %v347, %v567
    %569 = vmatprep.mubr.f32.mxu0 %v381
    %570 = vmatmul.mubr.f32.gmra.mxu0 %v50
    %v571 = vpop.f32.mrf.mxu0
    %v572 = vadd.f32 %v351, %v571
    %v573 = vpop.f32.mrf.mxu0
    %v574 = vadd.f32 %v353, %v573
    %575 = vmatprep.mubr.f32.mxu0 %v384
    %576 = vmatmul.mubr.f32.gmra.mxu0 %v52
    %v577 = vpop.f32.mrf.mxu0
    %v578 = vadd.f32 %v357, %v577
    %v579 = vpop.f32.mrf.mxu0
    %v580 = vadd.f32 %v359, %v579
    %581 = vmatprep.mubr.f32.mxu0 %v387
    %582 = vmatmul.mubr.f32.gmra.mxu0 %v54
    %v583 = vpop.f32.mrf.mxu0
    %v584 = vadd.f32 %v363, %v583
    %v585 = vpop.f32.mrf.mxu0
    %v586 = vadd.f32 %v365, %v585
    %587 = vmatprep.mubr.f32.mxu0 %v390
    %588 = vmatmul.mubr.f32.gmra.mxu0 %v56
    %v589 = vpop.f32.mrf.mxu0
    %v590 = vadd.f32 %v369, %v589
    %v591 = vpop.f32.mrf.mxu0
    %v592 = vadd.f32 %v371, %v591
    %593 = vdwg.mxu0
    %594 = vst [vmem:[#allocation7] sm:$0xff] %v459
    %595 = vst [vmem:[#allocation7 + $0x8] sm:$0xff] %v461
    %596 = vst [vmem:[#allocation7 + $0x10] sm:$0xff] %v560
    %vm597 = vcmask 465920
    %598 = vst.msk [vmem:[#allocation7 + $0x18] sm:$0xff] %vm597, %v562
    %599 = vst [vmem:[#allocation7 + $0x20] sm:$0xff] %v465
    %600 = vst [vmem:[#allocation7 + $0x28] sm:$0xff] %v467
    %601 = vst [vmem:[#allocation7 + $0x30] sm:$0xff] %v566
    %602 = vst.msk [vmem:[#allocation7 + $0x38] sm:$0xff] %vm597, %v568
    %603 = vst [vmem:[#allocation7 + $0x40] sm:$0xff] %v471
    %604 = vst [vmem:[#allocation7 + $0x48] sm:$0xff] %v473
    %605 = vst [vmem:[#allocation7 + $0x50] sm:$0xff] %v572
    %606 = vst.msk [vmem:[#allocation7 + $0x58] sm:$0xff] %vm597, %v574
    %607 = vst [vmem:[#allocation7 + $0x60] sm:$0xff] %v477
    %608 = vst [vmem:[#allocation7 + $0x68] sm:$0xff] %v479
    %609 = vst [vmem:[#allocation7 + $0x70] sm:$0xff] %v578
    %610 = vst.msk [vmem:[#allocation7 + $0x78] sm:$0xff] %vm597, %v580
    %611 = vst [vmem:[#allocation7 + $0x80] sm:$0xff] %v483
    %612 = vst [vmem:[#allocation7 + $0x88] sm:$0xff] %v485
    %613 = vst [vmem:[#allocation7 + $0x90] sm:$0xff] %v584
    %614 = vst.msk [vmem:[#allocation7 + $0x98] sm:$0xff] %vm597, %v586
    %615 = vst [vmem:[#allocation7 + $0xa0] sm:$0xff] %v489
    %616 = vst [vmem:[#allocation7 + $0xa8] sm:$0xff] %v491
    %617 = vst [vmem:[#allocation7 + $0xb0] sm:$0xff] %v590
    %618 = vst.msk [vmem:[#allocation7 + $0xb8] sm:$0xff] %vm597, %v592
    // Predicated region
    $region26: #{tpu_custom_call.1} parent=1 // pred_check
      _
    $region27: #{tpu_custom_call.1} parent=1 // pred_check_branch
      %620 = sbr.rel (0) target = $region29
    $region28: #{tpu_custom_call.1} parent=1 // pred_region
      %s622 = ssub.s32 3072, 3072
      %623 = vsyncadd [#allocation4], %s622
      %s624 = sshll.u32 [#allocation7], 4
      %s625 = int_to_ptr.vmem [resolvable:$true] %s624
      %630 = dma.vmem_to_hbm [thread:$0]  %s625, 3072, %s4, [#allocation4], 512, 512, 32
    $region29: #{tpu_custom_call.1} parent=1 // pred_fallthru
      _
    // Predicated region
    $region30: #{tpu_custom_call.1} parent=1 // pred_check
      _
    $region31: #{tpu_custom_call.1} parent=1 // pred_check_branch
      %632 = sbr.rel (0) target = $region33
    $region32: #{tpu_custom_call.1} parent=1 // pred_region
      %633 = dma.done [#allocation4], 3072
    $region33: #{tpu_custom_call.1} parent=1 // pred_fallthru
      _
    %634 = vsyncpa [#allocation3], 1
    %635 = vsyncpa [#allocation6], 1
    %636 = vsyncpa [#allocation4], 1

</llo_original>
